<compile_context>
chip_gen: v5e
topology: v5e:2x2
jax: 0.10.0
libtpu: 0.0.40
codegen_flags: <defaults>
</compile_context>

<pallas_src>
import functools

import jax
import jax.numpy as jnp
from jax.experimental import pallas as pl
from jax.experimental.pallas import tpu as pltpu


def _sigmoid_via_tanh(z):
    # One EUP transcendental per element instead of exp + divide.
    return 0.5 * jnp.tanh(0.5 * z) + 0.5


def _lstm_cell_kernel(x_ref, hid_ref, w_ih_ref, w_hh_ref, b_ref, hid_out_ref,
                      *, hidden_size, compute_dtype):
    """One LSTM-cell step on a (tb, ...) batch tile.

    hid_ref / hid_out_ref carry the packed (tb, 2H) = [h | c] state, so the
    wrapper never splits or re-concatenates the state in HBM.
    """
    H = hidden_size

    # Matmul operands in the MXU compute dtype (bf16 is the fast path on
    # v5e/v6e/v7x); accumulation forced to f32.  Two accumulating matmuls
    # replace the previous wrapper-side [x | h] concat (an extra HBM pass).
    x = x_ref[...].astype(compute_dtype)
    h = hid_ref[:, :H].astype(compute_dtype)

    gates = jnp.dot(x, w_ih_ref[...], preferred_element_type=jnp.float32)
    gates = gates + jnp.dot(h, w_hh_ref[...],
                            preferred_element_type=jnp.float32)
    gates = gates + b_ref[...].astype(jnp.float32)

    # Gate order along the 4H axis follows nn.LSTMCell: [i, f, g, o].
    # (Slices are lane-aligned when H % 128 == 0; at the small demo H they
    #  become masked sub-vreg ops, unavoidable without padding H.)
    i_g = _sigmoid_via_tanh(gates[:, 0 * H:1 * H])
    f_g = _sigmoid_via_tanh(gates[:, 1 * H:2 * H])
    g_g = jnp.tanh(gates[:, 2 * H:3 * H])
    o_g = _sigmoid_via_tanh(gates[:, 3 * H:4 * H])

    # Cell-state update in f32 regardless of the storage dtype.
    c = hid_ref[:, H:].astype(jnp.float32)
    c_new = f_g * c + i_g * g_g
    h_new = o_g * jnp.tanh(c_new)

    hid_out_ref[:, :H] = h_new.astype(hid_out_ref.dtype)
    hid_out_ref[:, H:] = c_new.astype(hid_out_ref.dtype)


def fuse_lstm_params(w_ih, w_hh, b_ih, b_hh, *, param_dtype=None):
    """One-time parameter prep (hoist OUT of any recurrent per-step loop).

    Pre-transposes both weights to (K, 4H) so the kernel never transposes,
    folds the two biases (kept in f32), and optionally casts the weights to
    the MXU compute dtype (bf16 recommended: full-rate MXU, half the HBM
    traffic and half the resident VMEM footprint).
    """
    if param_dtype is None:
        param_dtype = w_ih.dtype
    w_ih_t = jnp.asarray(w_ih.T, dtype=param_dtype)        # (in, 4H)
    w_hh_t = jnp.asarray(w_hh.T, dtype=param_dtype)        # (H, 4H)
    bias = (b_ih.astype(jnp.float32)
            + b_hh.astype(jnp.float32)).reshape(1, -1)     # (1, 4H), f32
    return w_ih_t, w_hh_t, bias


def _round_up(x, m):
    return (x + m - 1) // m * m


def _resident_spec(block_shape, index_map, single_buffer):
    """Grid-invariant block; single-buffered where this JAX supports it."""
    if single_buffer and hasattr(pl, "Buffered"):
        try:
            return pl.BlockSpec(block_shape, index_map,
                                pipeline_mode=pl.Buffered(1))
        except TypeError:  # older JAX without BlockSpec.pipeline_mode
            pass
    return pl.BlockSpec(block_shape, index_map)


def lstm_cell_forward(x, hidden, w_ih_t, w_hh_t, bias, *, batch_block=None,
                      single_buffer_weights=True):
    """Pallas equivalent of LSTMCell.forward(input, hidden).

    Returns (h_new (B, H), hidden_new (B, 2H) = [h_new | c_new]).
    """
    B, in_features = x.shape
    _, four_h = w_ih_t.shape
    H = four_h // 4
    assert w_ih_t.shape == (in_features, four_h)
    assert w_hh_t.shape == (H, four_h)
    assert hidden.shape == (B, 2 * H)
    assert bias.shape == (1, four_h)

    state_dtype = hidden.dtype
    compute_dtype = w_ih_t.dtype

    # Batch tile: multiple of 8 sublanes.  Default = one big tile (best on
    # single-TC v5e/v6e: the grid is a serial loop, ~0.35us/step overhead).
    # On v7x (2 TCs) pass batch_block ~= cdiv(B, 2) so the "parallel" grid
    # has >= 2 programs and both cores get work.
    if batch_block is None:
        batch_block = B if B <= 512 else 512
    tb = min(_round_up(batch_block, 8), _round_up(B, 8))
    grid = (pl.cdiv(B, tb),)

    # Explicit scoped-VMEM budget (default 16/32 MiB is far below physical).
    bpe_w = jnp.dtype(compute_dtype).itemsize
    bpe_x = jnp.dtype(x.dtype).itemsize
    bpe_s = jnp.dtype(state_dtype).itemsize
    w_bytes = (w_ih_t.size + w_hh_t.size) * bpe_w
    w_bufs = 1 if single_buffer_weights else 2
    act_bytes = 2 * (tb * in_features * bpe_x + tb * 2 * H * bpe_s)
    out_bytes = 2 * tb * 2 * H * bpe_s
    gate_bytes = 4 * tb * four_h * 4         # f32 gate intermediates (approx)
    need = w_bufs * w_bytes + act_bytes + out_bytes + gate_bytes + bias.size * 4
    vmem_limit = int(min(max(int(1.5 * need), 32 * 2**20), 100 * 2**20))

    cost = pl.CostEstimate(
        flops=2 * B * (in_features + H) * four_h,
        transcendentals=5 * B * H,           # 3 sigmoid + 2 tanh per element
        bytes_accessed=(x.size * bpe_x + 2 * hidden.size * bpe_s
                        + w_bytes + bias.size * 4),
    )

    kernel = functools.partial(_lstm_cell_kernel, hidden_size=H,
                               compute_dtype=compute_dtype)

    hidden_new = pl.pallas_call(
        kernel,
        grid=grid,
        in_specs=[
            pl.BlockSpec((tb, in_features), lambda i: (i, 0)),        # x tile
            pl.BlockSpec((tb, 2 * H), lambda i: (i, 0)),              # [h|c]
            _resident_spec((in_features, four_h), lambda i: (0, 0),
                           single_buffer_weights),                    # W_ih^T
            _resident_spec((H, four_h), lambda i: (0, 0),
                           single_buffer_weights),                    # W_hh^T
            _resident_spec((1, four_h), lambda i: (0, 0),
                           single_buffer_weights),                    # bias
        ],
        out_specs=pl.BlockSpec((tb, 2 * H), lambda i: (i, 0)),        # [h|c] out
        out_shape=jax.ShapeDtypeStruct((B, 2 * H), state_dtype),
        compiler_params=pltpu.CompilerParams(
            dimension_semantics=("parallel",),
            vmem_limit_bytes=vmem_limit,
        ),
        cost_estimate=cost,
    )(x, hidden, w_ih_t, w_hh_t, bias)

    # Module interface also returns h_new; it is the first half of the packed
    # state (a view under jit — the kernel only writes each element once).
    return hidden_new[:, :H], hidden_new


def _reference_forward(x, hidden, w_ih, w_hh, b_ih, b_hh):
    """Pure-JAX reference matching torch nn.LSTMCell semantics."""
    H = w_ih.shape[0] // 4
    h, c = hidden[:, :H], hidden[:, H:]
    gates = x @ w_ih.T + b_ih + h @ w_hh.T + b_hh
    i = jax.nn.sigmoid(gates[:, 0 * H:1 * H])
    f = jax.nn.sigmoid(gates[:, 1 * H:2 * H])
    g = jnp.tanh(gates[:, 2 * H:3 * H])
    o = jax.nn.sigmoid(gates[:, 3 * H:4 * H])
    c_new = f * c + i * g
    h_new = o * jnp.tanh(c_new)
    return h_new, jnp.concatenate([h_new, c_new], axis=1)


if __name__ == "__main__":
    # NOTE: this demo shape (B=16, H=32) exercises correctness of the packed
    # state / two-matmul / bf16 paths, not performance — tune batch_block and
    # benchmark at production B/H (H a multiple of 128 keeps everything
    # lane-aligned).
    batch = 16
    in_features = 32
    hidden_size = 32

    key = jax.random.PRNGKey(0)
    kx, kh, k1, k2, k3, k4 = jax.random.split(key, 6)

    # PyTorch nn.LSTMCell init is U(-1/sqrt(H), 1/sqrt(H)).
    bound = 1.0 / jnp.sqrt(hidden_size)
    w_ih = jax.random.uniform(k1, (4 * hidden_size, in_features),
                              jnp.float32, -bound, bound)
    w_hh = jax.random.uniform(k2, (4 * hidden_size, hidden_size),
                              jnp.float32, -bound, bound)
    b_ih = jax.random.uniform(k3, (4 * hidden_size,), jnp.float32, -bound, bound)
    b_hh = jax.random.uniform(k4, (4 * hidden_size,), jnp.float32, -bound, bound)

    x = jax.random.normal(kx, (batch, in_features), jnp.float32)
    hidden = jax.random.normal(kh, (batch, 2 * hidden_size), jnp.float32)

    h_ref, hid_ref = _reference_forward(x, hidden, w_ih, w_hh, b_ih, b_hh)

    def run(param_dtype, batch_block, single_buffer_weights):
        params = fuse_lstm_params(w_ih, w_hh, b_ih, b_hh,
                                  param_dtype=param_dtype)
        step = jax.jit(functools.partial(
            lstm_cell_forward, batch_block=batch_block,
            single_buffer_weights=single_buffer_weights))
        out = step(x, hidden, *params)
        jax.block_until_ready(out)
        return out

    def run_all(single_buffer_weights):
        # f32 path, 2-program "parallel" batch grid with resident weights.
        r32 = run(jnp.float32, 8, single_buffer_weights)
        # bf16 MXU path (f32 accumulation + f32 gate/state math), 1 big tile.
        rbf = run(jnp.bfloat16, None, single_buffer_weights)
        return r32, rbf

    try:
        (h32, hid32), (hbf, hidbf) = run_all(True)
    except Exception:
        # Fallback for JAX versions where single-buffered weight blocks
        # (pipeline_mode=pl.Buffered(1)) are not supported.
        (h32, hid32), (hbf, hidbf) = run_all(False)

    assert h32.shape == (batch, hidden_size)
    assert hid32.shape == (batch, 2 * hidden_size)
    assert jnp.allclose(h32, h_ref, atol=1e-4, rtol=1e-4)
    assert jnp.allclose(hid32, hid_ref, atol=1e-4, rtol=1e-4)
    # bf16 weights: looser tolerance (rounding of the MXU operands only).
    assert jnp.allclose(hbf, h_ref, atol=5e-2, rtol=5e-2)
    assert jnp.allclose(hidbf, hid_ref, atol=5e-2, rtol=5e-2)

    print("KERNEL_OK")
</pallas_src>

<mosaic_0001>
module attributes {stable_mosaic.version = 11 : i64} {
  func.func @_lstm_cell_kernel(%arg0: i32, %arg1: memref<8x32xf32, #tpu.memory_space<vmem>>, %arg2: memref<8x64xf32, #tpu.memory_space<vmem>>, %arg3: memref<32x128xf32, #tpu.memory_space<vmem>>, %arg4: memref<32x128xf32, #tpu.memory_space<vmem>>, %arg5: memref<1x128xf32, #tpu.memory_space<vmem>>, %arg6: memref<8x64xf32, #tpu.memory_space<vmem>>) attributes {dimension_semantics = [#tpu.dimension_semantics<parallel>], iteration_bounds = array<i64: 2>, scalar_prefetch = 0 : i64, scratch_operands = 0 : i64, tpu.core_type = #tpu.core_type<tc>, window_params = [{transform_indices = @transform_0, window_bounds = array<i64: 8, 32>}, {transform_indices = @transform_1, window_bounds = array<i64: 8, 64>}, {pipeline_mode = #tpu.pipeline_mode<synchronous>, transform_indices = @transform_2, window_bounds = array<i64: 32, 128>}, {pipeline_mode = #tpu.pipeline_mode<synchronous>, transform_indices = @transform_3, window_bounds = array<i64: 32, 128>}, {pipeline_mode = #tpu.pipeline_mode<synchronous>, transform_indices = @transform_4, window_bounds = array<i64: 1, 128>}, {transform_indices = @transform_5, window_bounds = array<i64: 8, 64>}]} {
    %c0 = arith.constant 0 : index
    %c0_0 = arith.constant 0 : index
    %0 = vector.load %arg1[%c0, %c0_0] : memref<8x32xf32, #tpu.memory_space<vmem>>, vector<8x32xf32>
    %c0_1 = arith.constant 0 : index
    %c0_2 = arith.constant 0 : index
    %1 = vector.load %arg2[%c0_1, %c0_2] : memref<8x64xf32, #tpu.memory_space<vmem>>, vector<8x32xf32>
    %c0_3 = arith.constant 0 : index
    %c0_4 = arith.constant 0 : index
    %2 = vector.load %arg3[%c0_3, %c0_4] : memref<32x128xf32, #tpu.memory_space<vmem>>, vector<32x128xf32>
    %cst = arith.constant dense<0.000000e+00> : vector<8x128xf32>
    %3 = tpu.matmul %0, %2, %cst {dimension_numbers = #tpu.dot_dimension_numbers<[1], [0], [0], [1], [0, 0, 1, 1], [], []>} : vector<8x32xf32>, vector<32x128xf32>, vector<8x128xf32> -> vector<8x128xf32>
    %c0_5 = arith.constant 0 : index
    %c0_6 = arith.constant 0 : index
    %4 = vector.load %arg4[%c0_5, %c0_6] : memref<32x128xf32, #tpu.memory_space<vmem>>, vector<32x128xf32>
    %cst_7 = arith.constant dense<0.000000e+00> : vector<8x128xf32>
    %5 = tpu.matmul %1, %4, %cst_7 {dimension_numbers = #tpu.dot_dimension_numbers<[1], [0], [0], [1], [0, 0, 1, 1], [], []>} : vector<8x32xf32>, vector<32x128xf32>, vector<8x128xf32> -> vector<8x128xf32>
    %6 = arith.addf %3, %5 : vector<8x128xf32>
    %c0_8 = arith.constant 0 : index
    %c0_9 = arith.constant 0 : index
    %7 = vector.load %arg5[%c0_8, %c0_9] : memref<1x128xf32, #tpu.memory_space<vmem>>, vector<1x128xf32>
    %8 = vector.broadcast %7 : vector<1x128xf32> to vector<8x128xf32>
    %9 = arith.addf %6, %8 : vector<8x128xf32>
    %10 = vector.extract_strided_slice %9 {offsets = [0, 0], sizes = [8, 32], strides = [1, 1]} : vector<8x128xf32> to vector<8x32xf32>
    %cst_10 = arith.constant 5.000000e-01 : f32
    %11 = vector.broadcast %cst_10 : f32 to vector<8x32xf32>
    %12 = arith.mulf %11, %10 : vector<8x32xf32>
    %13 = math.tanh %12 : vector<8x32xf32>
    %cst_11 = arith.constant 5.000000e-01 : f32
    %14 = vector.broadcast %cst_11 : f32 to vector<8x32xf32>
    %15 = arith.mulf %14, %13 : vector<8x32xf32>
    %cst_12 = arith.constant 5.000000e-01 : f32
    %16 = vector.broadcast %cst_12 : f32 to vector<8x32xf32>
    %17 = arith.addf %15, %16 : vector<8x32xf32>
    %18 = vector.extract_strided_slice %9 {offsets = [0, 32], sizes = [8, 32], strides = [1, 1]} : vector<8x128xf32> to vector<8x32xf32>
    %cst_13 = arith.constant 5.000000e-01 : f32
    %19 = vector.broadcast %cst_13 : f32 to vector<8x32xf32>
    %20 = arith.mulf %19, %18 : vector<8x32xf32>
    %21 = math.tanh %20 : vector<8x32xf32>
    %cst_14 = arith.constant 5.000000e-01 : f32
    %22 = vector.broadcast %cst_14 : f32 to vector<8x32xf32>
    %23 = arith.mulf %22, %21 : vector<8x32xf32>
    %cst_15 = arith.constant 5.000000e-01 : f32
    %24 = vector.broadcast %cst_15 : f32 to vector<8x32xf32>
    %25 = arith.addf %23, %24 : vector<8x32xf32>
    %26 = vector.extract_strided_slice %9 {offsets = [0, 64], sizes = [8, 32], strides = [1, 1]} : vector<8x128xf32> to vector<8x32xf32>
    %27 = math.tanh %26 : vector<8x32xf32>
    %28 = vector.extract_strided_slice %9 {offsets = [0, 96], sizes = [8, 32], strides = [1, 1]} : vector<8x128xf32> to vector<8x32xf32>
    %cst_16 = arith.constant 5.000000e-01 : f32
    %29 = vector.broadcast %cst_16 : f32 to vector<8x32xf32>
    %30 = arith.mulf %29, %28 : vector<8x32xf32>
    %31 = math.tanh %30 : vector<8x32xf32>
    %cst_17 = arith.constant 5.000000e-01 : f32
    %32 = vector.broadcast %cst_17 : f32 to vector<8x32xf32>
    %33 = arith.mulf %32, %31 : vector<8x32xf32>
    %cst_18 = arith.constant 5.000000e-01 : f32
    %34 = vector.broadcast %cst_18 : f32 to vector<8x32xf32>
    %35 = arith.addf %33, %34 : vector<8x32xf32>
    %c0_19 = arith.constant 0 : index
    %c32 = arith.constant 32 : index
    %36 = vector.load %arg2[%c0_19, %c32] : memref<8x64xf32, #tpu.memory_space<vmem>>, vector<8x32xf32>
    %37 = arith.mulf %25, %36 : vector<8x32xf32>
    %38 = arith.mulf %17, %27 : vector<8x32xf32>
    %39 = arith.addf %37, %38 : vector<8x32xf32>
    %40 = math.tanh %39 : vector<8x32xf32>
    %41 = arith.mulf %35, %40 : vector<8x32xf32>
    %c0_20 = arith.constant 0 : index
    %c0_21 = arith.constant 0 : index
    %42 = vector.load %arg6[%c0_20, %c0_21] : memref<8x64xf32, #tpu.memory_space<vmem>>, vector<8x32xf32>
    tpu.vector_store %arg6[%c0_20, %c0_21], %41 {strides = array<i32>} : memref<8x64xf32, #tpu.memory_space<vmem>>, vector<8x32xf32>,
    %c0_22 = arith.constant 0 : index
    %c32_23 = arith.constant 32 : index
    %43 = vector.load %arg6[%c0_22, %c32_23] : memref<8x64xf32, #tpu.memory_space<vmem>>, vector<8x32xf32>
    tpu.vector_store %arg6[%c0_22, %c32_23], %39 {strides = array<i32>} : memref<8x64xf32, #tpu.memory_space<vmem>>, vector<8x32xf32>,
    return
  }
  func.func @transform_0(%arg0: i32) -> (i32, i32) {
    %c0_i32 = arith.constant 0 : i32
    %c0_i32_0 = arith.constant 0 : i32
    return %arg0, %c0_i32 : i32, i32
  }
  func.func @transform_1(%arg0: i32) -> (i32, i32) {
    %c0_i32 = arith.constant 0 : i32
    %c0_i32_0 = arith.constant 0 : i32
    return %arg0, %c0_i32 : i32, i32
  }
  func.func @transform_2(%arg0: i32) -> (i32, i32) {
    %c0_i32 = arith.constant 0 : i32
    %c0_i32_0 = arith.constant 0 : i32
    %c0_i32_1 = arith.constant 0 : i32
    return %c0_i32, %c0_i32_0 : i32, i32
  }
  func.func @transform_3(%arg0: i32) -> (i32, i32) {
    %c0_i32 = arith.constant 0 : i32
    %c0_i32_0 = arith.constant 0 : i32
    %c0_i32_1 = arith.constant 0 : i32
    return %c0_i32, %c0_i32_0 : i32, i32
  }
  func.func @transform_4(%arg0: i32) -> (i32, i32) {
    %c0_i32 = arith.constant 0 : i32
    %c0_i32_0 = arith.constant 0 : i32
    %c0_i32_1 = arith.constant 0 : i32
    return %c0_i32, %c0_i32_0 : i32, i32
  }
  func.func @transform_5(%arg0: i32) -> (i32, i32) {
    %c0_i32 = arith.constant 0 : i32
    %c0_i32_0 = arith.constant 0 : i32
    return %arg0, %c0_i32 : i32, i32
  }
}

module attributes {stable_mosaic.version = 11 : i64} {
  func.func @_lstm_cell_kernel(%arg0: i32, %arg1: memref<8x32xf32, #tpu.memory_space<vmem>>, %arg2: memref<8x64xf32, #tpu.memory_space<vmem>>, %arg3: memref<32x128xf32, #tpu.memory_space<vmem>>, %arg4: memref<32x128xf32, #tpu.memory_space<vmem>>, %arg5: memref<1x128xf32, #tpu.memory_space<vmem>>, %arg6: memref<8x64xf32, #tpu.memory_space<vmem>>) attributes {dimension_semantics = [#tpu.dimension_semantics<parallel>], iteration_bounds = array<i64: 2>, scalar_prefetch = 0 : i64, scratch_operands = 0 : i64, tpu.core_type = #tpu.core_type<tc>, window_params = [{transform_indices = @transform_0, window_bounds = array<i64: 8, 32>}, {transform_indices = @transform_1, window_bounds = array<i64: 8, 64>}, {pipeline_mode = #tpu.pipeline_mode<synchronous>, transform_indices = @transform_2, window_bounds = array<i64: 32, 128>}, {pipeline_mode = #tpu.pipeline_mode<synchronous>, transform_indices = @transform_3, window_bounds = array<i64: 32, 128>}, {pipeline_mode = #tpu.pipeline_mode<synchronous>, transform_indices = @transform_4, window_bounds = array<i64: 1, 128>}, {transform_indices = @transform_5, window_bounds = array<i64: 8, 64>}]} {
    %c0 = arith.constant 0 : index
    %c0_0 = arith.constant 0 : index
    %0 = vector.load %arg1[%c0, %c0_0] : memref<8x32xf32, #tpu.memory_space<vmem>>, vector<8x32xf32>
    %c0_1 = arith.constant 0 : index
    %c0_2 = arith.constant 0 : index
    %1 = vector.load %arg2[%c0_1, %c0_2] : memref<8x64xf32, #tpu.memory_space<vmem>>, vector<8x32xf32>
    %c0_3 = arith.constant 0 : index
    %c0_4 = arith.constant 0 : index
    %2 = vector.load %arg3[%c0_3, %c0_4] : memref<32x128xf32, #tpu.memory_space<vmem>>, vector<32x128xf32>
    %cst = arith.constant dense<0.000000e+00> : vector<8x128xf32>
    %3 = tpu.matmul %0, %2, %cst {dimension_numbers = #tpu.dot_dimension_numbers<[1], [0], [0], [1], [0, 0, 1, 1], [], []>} : vector<8x32xf32>, vector<32x128xf32>, vector<8x128xf32> -> vector<8x128xf32>
    %c0_5 = arith.constant 0 : index
    %c0_6 = arith.constant 0 : index
    %4 = vector.load %arg4[%c0_5, %c0_6] : memref<32x128xf32, #tpu.memory_space<vmem>>, vector<32x128xf32>
    %cst_7 = arith.constant dense<0.000000e+00> : vector<8x128xf32>
    %5 = tpu.matmul %1, %4, %cst_7 {dimension_numbers = #tpu.dot_dimension_numbers<[1], [0], [0], [1], [0, 0, 1, 1], [], []>} : vector<8x32xf32>, vector<32x128xf32>, vector<8x128xf32> -> vector<8x128xf32>
    %6 = arith.addf %3, %5 : vector<8x128xf32>
    %c0_8 = arith.constant 0 : index
    %c0_9 = arith.constant 0 : index
    %7 = vector.load %arg5[%c0_8, %c0_9] : memref<1x128xf32, #tpu.memory_space<vmem>>, vector<1x128xf32>
    %8 = vector.broadcast %7 : vector<1x128xf32> to vector<8x128xf32>
    %9 = arith.addf %6, %8 : vector<8x128xf32>
    %10 = vector.extract_strided_slice %9 {offsets = [0, 0], sizes = [8, 32], strides = [1, 1]} : vector<8x128xf32> to vector<8x32xf32>
    %cst_10 = arith.constant 5.000000e-01 : f32
    %11 = vector.broadcast %cst_10 : f32 to vector<8x32xf32>
    %12 = arith.mulf %11, %10 : vector<8x32xf32>
    %13 = math.tanh %12 : vector<8x32xf32>
    %cst_11 = arith.constant 5.000000e-01 : f32
    %14 = vector.broadcast %cst_11 : f32 to vector<8x32xf32>
    %15 = arith.mulf %14, %13 : vector<8x32xf32>
    %cst_12 = arith.constant 5.000000e-01 : f32
    %16 = vector.broadcast %cst_12 : f32 to vector<8x32xf32>
    %17 = arith.addf %15, %16 : vector<8x32xf32>
    %18 = vector.extract_strided_slice %9 {offsets = [0, 32], sizes = [8, 32], strides = [1, 1]} : vector<8x128xf32> to vector<8x32xf32>
    %cst_13 = arith.constant 5.000000e-01 : f32
    %19 = vector.broadcast %cst_13 : f32 to vector<8x32xf32>
    %20 = arith.mulf %19, %18 : vector<8x32xf32>
    %21 = math.tanh %20 : vector<8x32xf32>
    %cst_14 = arith.constant 5.000000e-01 : f32
    %22 = vector.broadcast %cst_14 : f32 to vector<8x32xf32>
    %23 = arith.mulf %22, %21 : vector<8x32xf32>
    %cst_15 = arith.constant 5.000000e-01 : f32
    %24 = vector.broadcast %cst_15 : f32 to vector<8x32xf32>
    %25 = arith.addf %23, %24 : vector<8x32xf32>
    %26 = vector.extract_strided_slice %9 {offsets = [0, 64], sizes = [8, 32], strides = [1, 1]} : vector<8x128xf32> to vector<8x32xf32>
    %27 = math.tanh %26 : vector<8x32xf32>
    %28 = vector.extract_strided_slice %9 {offsets = [0, 96], sizes = [8, 32], strides = [1, 1]} : vector<8x128xf32> to vector<8x32xf32>
    %cst_16 = arith.constant 5.000000e-01 : f32
    %29 = vector.broadcast %cst_16 : f32 to vector<8x32xf32>
    %30 = arith.mulf %29, %28 : vector<8x32xf32>
    %31 = math.tanh %30 : vector<8x32xf32>
    %cst_17 = arith.constant 5.000000e-01 : f32
    %32 = vector.broadcast %cst_17 : f32 to vector<8x32xf32>
    %33 = arith.mulf %32, %31 : vector<8x32xf32>
    %cst_18 = arith.constant 5.000000e-01 : f32
    %34 = vector.broadcast %cst_18 : f32 to vector<8x32xf32>
    %35 = arith.addf %33, %34 : vector<8x32xf32>
    %c0_19 = arith.constant 0 : index
    %c32 = arith.constant 32 : index
    %36 = vector.load %arg2[%c0_19, %c32] : memref<8x64xf32, #tpu.memory_space<vmem>>, vector<8x32xf32>
    %37 = arith.mulf %25, %36 : vector<8x32xf32>
    %38 = arith.mulf %17, %27 : vector<8x32xf32>
    %39 = arith.addf %37, %38 : vector<8x32xf32>
    %40 = math.tanh %39 : vector<8x32xf32>
    %41 = arith.mulf %35, %40 : vector<8x32xf32>
    %c0_20 = arith.constant 0 : index
    %c0_21 = arith.constant 0 : index
    %42 = vector.load %arg6[%c0_20, %c0_21] : memref<8x64xf32, #tpu.memory_space<vmem>>, vector<8x32xf32>
    tpu.vector_store %arg6[%c0_20, %c0_21], %41 {strides = array<i32>} : memref<8x64xf32, #tpu.memory_space<vmem>>, vector<8x32xf32>,
    %c0_22 = arith.constant 0 : index
    %c32_23 = arith.constant 32 : index
    %43 = vector.load %arg6[%c0_22, %c32_23] : memref<8x64xf32, #tpu.memory_space<vmem>>, vector<8x32xf32>
    tpu.vector_store %arg6[%c0_22, %c32_23], %39 {strides = array<i32>} : memref<8x64xf32, #tpu.memory_space<vmem>>, vector<8x32xf32>,
    return
  }
  func.func @transform_0(%arg0: i32) -> (i32, i32) {
    %c0_i32 = arith.constant 0 : i32
    %c0_i32_0 = arith.constant 0 : i32
    return %arg0, %c0_i32 : i32, i32
  }
  func.func @transform_1(%arg0: i32) -> (i32, i32) {
    %c0_i32 = arith.constant 0 : i32
    %c0_i32_0 = arith.constant 0 : i32
    return %arg0, %c0_i32 : i32, i32
  }
  func.func @transform_2(%arg0: i32) -> (i32, i32) {
    %c0_i32 = arith.constant 0 : i32
    %c0_i32_0 = arith.constant 0 : i32
    %c0_i32_1 = arith.constant 0 : i32
    return %c0_i32, %c0_i32_0 : i32, i32
  }
  func.func @transform_3(%arg0: i32) -> (i32, i32) {
    %c0_i32 = arith.constant 0 : i32
    %c0_i32_0 = arith.constant 0 : i32
    %c0_i32_1 = arith.constant 0 : i32
    return %c0_i32, %c0_i32_0 : i32, i32
  }
  func.func @transform_4(%arg0: i32) -> (i32, i32) {
    %c0_i32 = arith.constant 0 : i32
    %c0_i32_0 = arith.constant 0 : i32
    %c0_i32_1 = arith.constant 0 : i32
    return %c0_i32, %c0_i32_0 : i32, i32
  }
  func.func @transform_5(%arg0: i32) -> (i32, i32) {
    %c0_i32 = arith.constant 0 : i32
    %c0_i32_0 = arith.constant 0 : i32
    return %arg0, %c0_i32 : i32, i32
  }
}

</mosaic_0001>

<llo_original>
// kernel: lstm_cell_forward.1
$region0: #{lstm_cell_forward.1}
  #allocation0 [shape = 'u32[]', space=smem, size = 0x4, offset = 0x4, fixed_abs, tag = 'smem constant byte address 0x4 - core index']
  #allocation1 [shape = 'u32[72,128]{1,0:T(1,128)}', space=vmem, size = 0x9000, scoped, tag = 'internal scratch']
  %s0 = inlined_call_operand.hbm [shape: f32[16,32], index: 0, kind: input, shape index: {}]
  %s1 = inlined_call_operand.hbm [shape: f32[16,64], index: 1, kind: input, shape index: {}]
  %s2 = inlined_call_operand.hbm [shape: f32[32,128], index: 2, kind: input, shape index: {}]
  %s3 = inlined_call_operand.hbm [shape: f32[32,128], index: 3, kind: input, shape index: {}]
  %s4 = inlined_call_operand.vmem [shape: f32[1,128], index: 4, kind: input, shape index: {}]
  %s5 = inlined_call_operand.vmem [shape: f32[16,64], index: 5, kind: output, shape index: {}]
  %s6 = sld [smem:[#allocation0]]
  $region69: #{lstm_cell_forward.1} parent=0
    _
  %s8 = ssub.s32 1, %s6
  %s9 = scalar_select 0, %s8, %s6
  $region1: #{lstm_cell_forward.1} parent=0
    #allocation2 [shape = 'u8[8192]{0}', space=vmem, size = 0x2000, scoped, tag = 'input window, operand 0']
    #allocation3 [shape = 's32[2]{0}', space=sflag, size = 0x8, scoped, tag = 'scoped memory for lstm_cell_forward.1']
    #allocation4 [shape = 'u8[8192]{0}', space=vmem, size = 0x2000, scoped, tag = 'input window, operand 1']
    #allocation5 [shape = 's32[2]{0}', space=sflag, size = 0x8, scoped, tag = 'scoped memory for lstm_cell_forward.1']
    #allocation6 [shape = 'u8[16384]{0}', space=vmem, size = 0x4000, scoped, tag = 'input window, operand 2, single buffered']
    #allocation7 [shape = 'u8[16384]{0}', space=vmem, size = 0x4000, scoped, tag = 'input window, operand 3, single buffered']
    #allocation8 [shape = 's32[1]{0}', space=sflag, size = 0x4, scoped, tag = 'scoped memory for lstm_cell_forward.1']
    %10 = vsyncpa [#allocation3], 0
    %s11 = scalar_lea.sflag [#allocation3], 1
    %12 = vsyncpa %s11, 0
    %13 = vsyncpa [#allocation5], 0
    %s14 = scalar_lea.sflag [#allocation5], 1
    %15 = vsyncpa %s14, 0
    %16 = vsyncpa [#allocation8], 0
    loop: start=0, step=1, limit=4
    $region2: #{lstm_cell_forward.1} parent=1 // loop_pre_header
      _
    $region3: #{lstm_cell_forward.1} parent=1 // loop_header
      %s18 = sphi 0, %s22
      %p19 = scmp.ge.s32.totalorder %s18, 4
      %s28 = sphi 0, %s30
      %s31 = sphi 0, %s28
      %s32 = sphi 0, %s31
      %s48 = sphi 0, %s32
      %s54 = sphi 0, %s56
      %s57 = sphi 0, %s54
      %s58 = sphi 0, %s57
      %s74 = sphi 0, %s58
      %s78 = sphi 0, %s78
      %s80 = sphi 0, %s78
      %s81 = sphi 0, %s80
      %s95 = sphi 0, %s81
      %s99 = sphi 0, %s99
      %s101 = sphi 0, %s99
      %s102 = sphi 0, %s101
      %s116 = sphi 0, %s102
      %s120 = sphi 0, %s120
      %s122 = sphi 0, %s120
      %s123 = sphi 0, %s122
      %s137 = sphi 0, %s123
      %s143 = sphi 0, %s145
      %s146 = sphi 0, %s143
      %s147 = sphi 0, %s146
      %s163 = sphi 0, %s147
    $region4: #{lstm_cell_forward.1} parent=1 // loop_header_branch
      %21 = sbr.rel (%p19) target = $region8
    $region5: #{lstm_cell_forward.1} parent=1 // loop_body
      %s23 = ssub.s32 %s18, 1
      %s24 = ssub.s32 %s18, 2
      %s25 = sadd.s32 %s18, 1
      %s26 = ssub.s32 %s18, %s25
      %p27 = scmp.eq.s32.totalorder %s26, 0
      %s29 = sadd.s32 %s28, 1
      %s30 = scalar_select %p27, %s28, %s29
      %p33 = pneg %p27
      %p34 = scmp.eq.s32.totalorder %s18, 1
      %p35 = por %p33, %p34
      %p36 = scmp.ne.s32.totalorder %s28, %s31
      %p37 = scmp.eq.s32.totalorder %s18, 0
      %p38 = por %p36, %p37
      %p39 = scmp.ne.s32.totalorder %s28, %s31
      %p40 = scmp.eq.s32.totalorder %s23, 1
      %p41 = por %p39, %p40
      %p42 = scmp.ne.s32.totalorder %s31, %s32
      %p43 = scmp.eq.s32.totalorder %s23, 0
      %p44 = por %p42, %p43
      %p45 = scmp.ne.s32.totalorder %s31, %s32
      %p46 = scmp.eq.s32.totalorder %s24, 1
      %p47 = por %p45, %p46
      %p49 = scmp.ne.s32.totalorder %s32, %s48
      %p50 = scmp.eq.s32.totalorder %s24, 0
      %p51 = por %p49, %p50
      %s52 = ssub.s32 %s18, %s25
      %p53 = scmp.eq.s32.totalorder %s52, 0
      %s55 = sadd.s32 %s54, 1
      %s56 = scalar_select %p53, %s54, %s55
      %p59 = pneg %p53
      %p60 = scmp.eq.s32.totalorder %s18, 1
      %p61 = por %p59, %p60
      %p62 = scmp.ne.s32.totalorder %s54, %s57
      %p63 = scmp.eq.s32.totalorder %s18, 0
      %p64 = por %p62, %p63
      %p65 = scmp.ne.s32.totalorder %s54, %s57
      %p66 = scmp.eq.s32.totalorder %s23, 1
      %p67 = por %p65, %p66
      %p68 = scmp.ne.s32.totalorder %s57, %s58
      %p69 = scmp.eq.s32.totalorder %s23, 0
      %p70 = por %p68, %p69
      %p71 = scmp.ne.s32.totalorder %s57, %s58
      %p72 = scmp.eq.s32.totalorder %s24, 1
      %p73 = por %p71, %p72
      %p75 = scmp.ne.s32.totalorder %s58, %s74
      %p76 = scmp.eq.s32.totalorder %s24, 0
      %p77 = por %p75, %p76
      %s79 = sadd.s32 %s78, 1
      %p82 = scmp.eq.s32.totalorder %s18, 1
      %p83 = scmp.ne.s32.totalorder %s78, %s80
      %p84 = scmp.eq.s32.totalorder %s18, 0
      %p85 = por %p83, %p84
      %p86 = scmp.ne.s32.totalorder %s78, %s80
      %p87 = scmp.eq.s32.totalorder %s23, 1
      %p88 = por %p86, %p87
      %p89 = scmp.ne.s32.totalorder %s80, %s81
      %p90 = scmp.eq.s32.totalorder %s23, 0
      %p91 = por %p89, %p90
      %p92 = scmp.ne.s32.totalorder %s80, %s81
      %p93 = scmp.eq.s32.totalorder %s24, 1
      %p94 = por %p92, %p93
      %p96 = scmp.ne.s32.totalorder %s81, %s95
      %p97 = scmp.eq.s32.totalorder %s24, 0
      %p98 = por %p96, %p97
      %s100 = sadd.s32 %s99, 1
      %p103 = scmp.eq.s32.totalorder %s18, 1
      %p104 = scmp.ne.s32.totalorder %s99, %s101
      %p105 = scmp.eq.s32.totalorder %s18, 0
      %p106 = por %p104, %p105
      %p107 = scmp.ne.s32.totalorder %s99, %s101
      %p108 = scmp.eq.s32.totalorder %s23, 1
      %p109 = por %p107, %p108
      %p110 = scmp.ne.s32.totalorder %s101, %s102
      %p111 = scmp.eq.s32.totalorder %s23, 0
      %p112 = por %p110, %p111
      %p113 = scmp.ne.s32.totalorder %s101, %s102
      %p114 = scmp.eq.s32.totalorder %s24, 1
      %p115 = por %p113, %p114
      %p117 = scmp.ne.s32.totalorder %s102, %s116
      %p118 = scmp.eq.s32.totalorder %s24, 0
      %p119 = por %p117, %p118
      %s121 = sadd.s32 %s120, 1
      %p124 = scmp.eq.s32.totalorder %s18, 1
      %p125 = scmp.ne.s32.totalorder %s120, %s122
      %p126 = scmp.eq.s32.totalorder %s18, 0
      %p127 = por %p125, %p126
      %p128 = scmp.ne.s32.totalorder %s120, %s122
      %p129 = scmp.eq.s32.totalorder %s23, 1
      %p130 = por %p128, %p129
      %p131 = scmp.ne.s32.totalorder %s122, %s123
      %p132 = scmp.eq.s32.totalorder %s23, 0
      %p133 = por %p131, %p132
      %p134 = scmp.ne.s32.totalorder %s122, %s123
      %p135 = scmp.eq.s32.totalorder %s24, 1
      %p136 = por %p134, %p135
      %p138 = scmp.ne.s32.totalorder %s123, %s137
      %p139 = scmp.eq.s32.totalorder %s24, 0
      %p140 = por %p138, %p139
      %s141 = ssub.s32 %s18, %s25
      %p142 = scmp.eq.s32.totalorder %s141, 0
      %s144 = sadd.s32 %s143, 1
      %s145 = scalar_select %p142, %s143, %s144
      %p148 = pneg %p142
      %p149 = scmp.eq.s32.totalorder %s18, 1
      %p150 = por %p148, %p149
      %p151 = scmp.ne.s32.totalorder %s143, %s146
      %p152 = scmp.eq.s32.totalorder %s18, 0
      %p153 = por %p151, %p152
      %p154 = scmp.ne.s32.totalorder %s143, %s146
      %p155 = scmp.eq.s32.totalorder %s23, 1
      %p156 = por %p154, %p155
      %p157 = scmp.ne.s32.totalorder %s146, %s147
      %p158 = scmp.eq.s32.totalorder %s23, 0
      %p159 = por %p157, %p158
      %p160 = scmp.ne.s32.totalorder %s146, %s147
      %p161 = scmp.eq.s32.totalorder %s24, 1
      %p162 = por %p160, %p161
      %p164 = scmp.ne.s32.totalorder %s147, %s163
      %p165 = scmp.eq.s32.totalorder %s24, 0
      %p166 = por %p164, %p165
      %p167 = scmp.le.s32.totalorder 1, %s18
      %p168 = scmp.lt.s32.totalorder %s18, 3
      %p169 = pnand %p167, %p168
      %p170 = pneg %p169
      // Predicated region
      $region9: #{lstm_cell_forward.1} parent=5 // pred_check
        _
      $region10: #{lstm_cell_forward.1} parent=5 // pred_check_branch
        %172 = sbr.rel (%p169) target = $region12
      $region11: #{lstm_cell_forward.1} parent=5 // pred_region
        %s173 = ssub.s32 %s18, 1
        // Predicated region
        $region13: #{lstm_cell_forward.1} parent=11 // pred_check
          %p174 = pneg %p91
        $region14: #{lstm_cell_forward.1} parent=11 // pred_check_branch
          %176 = sbr.rel (%p174) target = $region16
        $region15: #{lstm_cell_forward.1} parent=11 // pred_region
          %178 = vsyncadd [#allocation5], 0
          %s179 = sshll.u32 %s2, 4
          %s180 = int_to_ptr.hbm [resolvable:$true] %s179
          %s181 = sshll.u32 [#allocation6], 4
          %s182 = int_to_ptr.vmem [resolvable:$true] %s181
          %187 = dma.hbm_to_vmem [thread:$0]  %s180, 512, %s182, [#allocation5], 128, 128, 8
        $region16: #{lstm_cell_forward.1} parent=11 // pred_fallthru
          _
        // Predicated region
        $region17: #{lstm_cell_forward.1} parent=11 // pred_check
          %p188 = pneg %p112
        $region18: #{lstm_cell_forward.1} parent=11 // pred_check_branch
          %190 = sbr.rel (%p188) target = $region20
        $region19: #{lstm_cell_forward.1} parent=11 // pred_region
          %192 = vsyncadd [#allocation8], 0
          %s193 = sshll.u32 %s3, 4
          %s194 = int_to_ptr.hbm [resolvable:$true] %s193
          %s195 = sshll.u32 [#allocation7], 4
          %s196 = int_to_ptr.vmem [resolvable:$true] %s195
          %201 = dma.hbm_to_vmem [thread:$0]  %s194, 512, %s196, [#allocation8], 128, 128, 8
        $region20: #{lstm_cell_forward.1} parent=11 // pred_fallthru
          _
        // Predicated region
        $region21: #{lstm_cell_forward.1} parent=11 // pred_check
          %p202 = pneg %p133
        $region22: #{lstm_cell_forward.1} parent=11 // pred_check_branch
          %204 = sbr.rel (%p202) target = $region24
        $region23: #{lstm_cell_forward.1} parent=11 // pred_region
          _
        $region24: #{lstm_cell_forward.1} parent=11 // pred_fallthru
          _
      $region12: #{lstm_cell_forward.1} parent=5 // pred_fallthru
        _
      %p205 = scmp.lt.s32.totalorder %s18, 2
      // Predicated region
      $region25: #{lstm_cell_forward.1} parent=5 // pred_check
        %p206 = pneg %p205
      $region26: #{lstm_cell_forward.1} parent=5 // pred_check_branch
        %208 = sbr.rel (%p206) target = $region28
      $region27: #{lstm_cell_forward.1} parent=5 // pred_region
        // Predicated region
        $region29: #{lstm_cell_forward.1} parent=27 // pred_check
          %p209 = pneg %p38
        $region30: #{lstm_cell_forward.1} parent=27 // pred_check_branch
          %211 = sbr.rel (%p209) target = $region32
        $region31: #{lstm_cell_forward.1} parent=27 // pred_region
          %s212 = sand.u32 %s28, 1
          %s213 = scalar_lea.sflag [#allocation3], %s212
          %s214 = sand.u32 %s28, 1
          %s215 = smul.addr %s214, 8
          %s216 = scalar_lea.vmem [#allocation2], %s215
          %218 = vsyncadd %s213, 0
          %s219 = smul.addr %s18, 8
          %s220 = scalar_lea.hbm %s0, %s219
          %s222 = sshll.u32 %s220, 4
          %s223 = int_to_ptr.hbm [resolvable:$true] %s222
          %s224 = sshll.u32 %s216, 4
          %s225 = int_to_ptr.vmem [resolvable:$true] %s224
          %227 = dma.hbm_to_vmem [thread:$0]  %s223, 128, %s225, %s213
        $region32: #{lstm_cell_forward.1} parent=27 // pred_fallthru
          _
        // Predicated region
        $region33: #{lstm_cell_forward.1} parent=27 // pred_check
          %p228 = pneg %p64
        $region34: #{lstm_cell_forward.1} parent=27 // pred_check_branch
          %230 = sbr.rel (%p228) target = $region36
        $region35: #{lstm_cell_forward.1} parent=27 // pred_region
          %s231 = sand.u32 %s18, 1
          %s232 = scalar_lea.sflag [#allocation5], %s231
          %s233 = sand.u32 %s54, 1
          %s234 = smul.addr %s233, 8
          %s235 = scalar_lea.vmem [#allocation4], %s234
          %237 = vsyncadd %s232, 0
          %s238 = smul.addr %s18, 8
          %s239 = scalar_lea.hbm %s1, %s238
          %s241 = sshll.u32 %s239, 4
          %s242 = int_to_ptr.hbm [resolvable:$true] %s241
          %s243 = sshll.u32 %s235, 4
          %s244 = int_to_ptr.vmem [resolvable:$true] %s243
          %246 = dma.hbm_to_vmem [thread:$0]  %s242, 128, %s244, %s232
        $region36: #{lstm_cell_forward.1} parent=27 // pred_fallthru
          _
      $region28: #{lstm_cell_forward.1} parent=5 // pred_fallthru
        _
      %p247 = scmp.le.s32.totalorder 1, %s18
      %p248 = scmp.lt.s32.totalorder %s18, 3
      %p249 = pnand %p247, %p248
      %p250 = pneg %p249
      // Predicated region
      $region37: #{lstm_cell_forward.1} parent=5 // pred_check
        _
      $region38: #{lstm_cell_forward.1} parent=5 // pred_check_branch
        %252 = sbr.rel (%p249) target = $region40
      $region39: #{lstm_cell_forward.1} parent=5 // pred_region
        %s253 = ssub.s32 %s18, 1
        %s254 = sand.u32 %s31, 1
        %s255 = scalar_lea.sflag [#allocation3], %s254
        %s256 = sand.u32 %s31, 1
        %s257 = smul.addr %s256, 8
        %s258 = scalar_lea.vmem [#allocation2], %s257
        // Predicated region
        $region41: #{lstm_cell_forward.1} parent=39 // pred_check
          %p259 = pneg %p44
        $region42: #{lstm_cell_forward.1} parent=39 // pred_check_branch
          %261 = sbr.rel (%p259) target = $region44
        $region43: #{lstm_cell_forward.1} parent=39 // pred_region
          %263 = dma.done %s255, 128
        $region44: #{lstm_cell_forward.1} parent=39 // pred_fallthru
          _
        %s264 = sand.u32 %s23, 1
        %s265 = scalar_lea.sflag [#allocation5], %s264
        %s266 = sand.u32 %s57, 1
        %s267 = smul.addr %s266, 8
        %s268 = scalar_lea.vmem [#allocation4], %s267
        // Predicated region
        $region45: #{lstm_cell_forward.1} parent=39 // pred_check
          %p269 = pneg %p70
        $region46: #{lstm_cell_forward.1} parent=39 // pred_check_branch
          %271 = sbr.rel (%p269) target = $region48
        $region47: #{lstm_cell_forward.1} parent=39 // pred_region
          %273 = dma.done %s265, 128
        $region48: #{lstm_cell_forward.1} parent=39 // pred_fallthru
          _
        // Predicated region
        $region49: #{lstm_cell_forward.1} parent=39 // pred_check
          %p274 = pneg %p91
        $region50: #{lstm_cell_forward.1} parent=39 // pred_check_branch
          %276 = sbr.rel (%p274) target = $region52
        $region51: #{lstm_cell_forward.1} parent=39 // pred_region
          %278 = dma.done [#allocation5], 512
        $region52: #{lstm_cell_forward.1} parent=39 // pred_fallthru
          _
        // Predicated region
        $region53: #{lstm_cell_forward.1} parent=39 // pred_check
          %p279 = pneg %p112
        $region54: #{lstm_cell_forward.1} parent=39 // pred_check_branch
          %281 = sbr.rel (%p279) target = $region56
        $region55: #{lstm_cell_forward.1} parent=39 // pred_region
          %283 = dma.done [#allocation8], 512
        $region56: #{lstm_cell_forward.1} parent=39 // pred_fallthru
          _
        %s284 = sand.u32 %s31, 1
        %s285 = scalar_lea.sflag [#allocation3], %s284
        %s286 = sand.u32 %s31, 1
        %s287 = smul.addr %s286, 8
        %s288 = scalar_lea.vmem [#allocation2], %s287
        %p289 = pneg %p44
        %p290 = pneg %p41
        %s291 = sand.u32 %s23, 1
        %s292 = scalar_lea.sflag [#allocation5], %s291
        %s293 = sand.u32 %s57, 1
        %s294 = smul.addr %s293, 8
        %s295 = scalar_lea.vmem [#allocation4], %s294
        %p296 = pneg %p70
        %p297 = pneg %p67
        %p298 = pneg %p91
        %p299 = pneg %p88
        %p300 = pneg %p112
        %p301 = pneg %p109
        %p302 = pneg %p133
        %p303 = pneg %p130
        %p304 = pneg %p159
        %p305 = pneg %p156
        %p306 = scmp.lt.s32.totalorder %s23, 1
        %s307 = scalar_select %p306, %s23, 1
        %s308 = smul.addr %s307, 8
        %s309 = scalar_lea.vmem %s5, %s308
        %p310 = scmp.lt.s32.totalorder %s23, 1
        %s311 = scalar_select %p310, %s23, 1
        %s312 = smul.addr %s311, 8
        %s313 = scalar_lea.vmem %s5, %s312
        %v314 = vld [vmem:[%s258] sm:$0xff]
        %v315 = vld [vmem:[%s268] sm:$0xff]
        %v316 = vld [vmem:[#allocation6] sm:$0xff]
        %v317 = vld [vmem:[#allocation6 + $0x8] sm:$0xff]
        %v318 = vld [vmem:[#allocation6 + $0x10] sm:$0xff]
        %v319 = vld [vmem:[#allocation6 + $0x18] sm:$0xff]
        %v320 = vld [vmem:[#allocation7] sm:$0xff]
        %v321 = vld [vmem:[#allocation7 + $0x8] sm:$0xff]
        %v322 = vld [vmem:[#allocation7 + $0x10] sm:$0xff]
        %v323 = vld [vmem:[#allocation7 + $0x18] sm:$0xff]
        %vm324 = vcmask 261120
        %v326 = vsel %vm324, %v315, 0
        %328 = vmatpush.msra.mxu0 0.0
        %329 = vmatpush.msra.mxu0 0.0
        %330 = vmatpush.msra.mxu0 0.0
        %331 = vmatpush.msra.mxu0 0.0
        %332 = vmatpush.msra.mxu0 0.0
        %333 = vmatpush.msra.mxu0 0.0
        %334 = vmatpush.msra.mxu0 0.0
        %335 = vmatpush.msra.mxu0 0.0
        %336 = vmatpush.msra.mxu0 0.0
        %337 = vmatpush.msra.mxu0 0.0
        %338 = vmatpush.msra.mxu0 0.0
        %339 = vmatpush.msra.mxu0 0.0
        %340 = vmatpush.msra.mxu0 %v323
        %341 = vmatpush.msra.mxu0 %v322
        %342 = vmatpush.msra.mxu0 %v321
        %343 = vmatpush.msra.mxu0 %v320
        %344 = vmatmul.f32.gmra.mxu0 %v326
        %v345 = vpop.f32.mrf.mxu0
        %v346 = vadd.f32 0.0, %v345
        %347 = vdwg.mxu0
        %v349 = vsel %vm324, %v314, 0
        %351 = vmatpush.msra.mxu0 0.0
        %352 = vmatpush.msra.mxu0 0.0
        %353 = vmatpush.msra.mxu0 0.0
        %354 = vmatpush.msra.mxu0 0.0
        %355 = vmatpush.msra.mxu0 0.0
        %356 = vmatpush.msra.mxu0 0.0
        %357 = vmatpush.msra.mxu0 0.0
        %358 = vmatpush.msra.mxu0 0.0
        %359 = vmatpush.msra.mxu0 0.0
        %360 = vmatpush.msra.mxu0 0.0
        %361 = vmatpush.msra.mxu0 0.0
        %362 = vmatpush.msra.mxu0 0.0
        %363 = vmatpush.msra.mxu0 %v319
        %364 = vmatpush.msra.mxu0 %v318
        %365 = vmatpush.msra.mxu0 %v317
        %366 = vmatpush.msra.mxu0 %v316
        %367 = vmatmul.f32.gmra.mxu0 %v349
        %v368 = vpop.f32.mrf.mxu0
        %v369 = vadd.f32 %v346, %v368
        %370 = vdwg.mxu0
        %v371 = vld [vmem:[%s4] sm:$0x1]
        %v373 = vperm.slane %v371, 0
        %v375 = vadd.f32 %v369, %v373
        %v376 = vmul.f32 %v375, 0.5
        %v377 = vtanh.pop %v376
        %v378 = vmul.f32 %v377, 0.5
        %v379 = vadd.f32 %v378, 0.5
        %v380 = vtanh.pop %v375
        %v381 = vmul.f32 %v379, %v315
        %383 = vrot.lane.b32.xlu0 %v380, 64
        %v384 = vpop.permute.xlu0 %383
        %v386 = vmul.f32 %v379, %v384
        %388 = vrot.lane.b32.xlu0 %v386, 32
        %v389 = vpop.permute.xlu0 %388
        %v391 = vadd.f32 %v381, %v389
        %v392 = vtanh.pop %v391
        %394 = vrot.lane.b32.xlu0 %v392, 64
        %v395 = vpop.permute.xlu0 %394
        %v397 = vmul.f32 %v379, %v395
        %399 = vrot.lane.b32.xlu0 %v397, 32
        %v400 = vpop.permute.xlu0 %399
        %402 = vst.msk [vmem:[%s313] sm:$0xff] %vm324, %v400
        %vm403 = vcmask 523520
        %404 = vst.msk [vmem:[%s313] sm:$0xff] %vm403, %v391
        %p405 = scmp.lt.s32.totalorder %s23, 1
        %s406 = scalar_select %p405, %s23, 1
        %s407 = smul.addr %s406, 8
        %s408 = scalar_lea.vmem %s5, %s407
        // Predicated region
        $region57: #{lstm_cell_forward.1} parent=39 // pred_check
          %p409 = pneg %p156
        $region58: #{lstm_cell_forward.1} parent=39 // pred_check_branch
          %411 = sbr.rel (%p409) target = $region60
        $region59: #{lstm_cell_forward.1} parent=39 // pred_region
          _
        $region60: #{lstm_cell_forward.1} parent=39 // pred_fallthru
          _
      $region40: #{lstm_cell_forward.1} parent=5 // pred_fallthru
        _
      %p412 = scmp.le.s32.totalorder 2, %s18
      // Predicated region
      $region61: #{lstm_cell_forward.1} parent=5 // pred_check
        %p413 = pneg %p412
      $region62: #{lstm_cell_forward.1} parent=5 // pred_check_branch
        %415 = sbr.rel (%p413) target = $region64
      $region63: #{lstm_cell_forward.1} parent=5 // pred_region
        %s416 = ssub.s32 %s18, 2
        // Predicated region
        $region65: #{lstm_cell_forward.1} parent=63 // pred_check
          %p417 = pneg %p162
        $region66: #{lstm_cell_forward.1} parent=63 // pred_check_branch
          %419 = sbr.rel (%p417) target = $region68
        $region67: #{lstm_cell_forward.1} parent=63 // pred_region
          %p420 = scmp.lt.s32.totalorder %s24, 1
          %s421 = scalar_select %p420, %s24, 1
          %s422 = smul.addr %s421, 8
          %s423 = scalar_lea.vmem %s5, %s422
        $region68: #{lstm_cell_forward.1} parent=63 // pred_fallthru
          _
      $region64: #{lstm_cell_forward.1} parent=5 // pred_fallthru
        _
    $region6: #{lstm_cell_forward.1} parent=1 // loop_footer
      %s22 = sadd.s32 1, %s18
    $region7: #{lstm_cell_forward.1} parent=1 // loop_footer_branch
      %17 = sbr.rel target = $region3
    $region8: #{lstm_cell_forward.1} parent=1 // loop_exit
      _
    %424 = vsyncpa [#allocation3], 1
    %s425 = scalar_lea.sflag [#allocation3], 1
    %426 = vsyncpa %s425, 1
    %427 = vsyncpa [#allocation5], 1
    %s428 = scalar_lea.sflag [#allocation5], 1
    %429 = vsyncpa %s428, 1
    %430 = vsyncpa [#allocation8], 1

// kernel: lstm_cell_forward.1
$region0: #{lstm_cell_forward.1}
  #allocation0 [shape = 'u32[]', space=smem, size = 0x4, offset = 0x4, fixed_abs, tag = 'smem constant byte address 0x4 - core index']
  #allocation1 [shape = 'u32[72,128]{1,0:T(1,128)}', space=vmem, size = 0x9000, scoped, tag = 'internal scratch']
  %s0 = inlined_call_operand.hbm [shape: f32[16,32], index: 0, kind: input, shape index: {}]
  %s1 = inlined_call_operand.hbm [shape: f32[16,64], index: 1, kind: input, shape index: {}]
  %s2 = inlined_call_operand.hbm [shape: f32[32,128], index: 2, kind: input, shape index: {}]
  %s3 = inlined_call_operand.hbm [shape: f32[32,128], index: 3, kind: input, shape index: {}]
  %s4 = inlined_call_operand.vmem [shape: f32[1,128], index: 4, kind: input, shape index: {}]
  %s5 = inlined_call_operand.vmem [shape: f32[16,64], index: 5, kind: output, shape index: {}]
  %s6 = sld [smem:[#allocation0]]
  $region69: #{lstm_cell_forward.1} parent=0
    _
  %s8 = ssub.s32 1, %s6
  %s9 = scalar_select 0, %s8, %s6
  $region1: #{lstm_cell_forward.1} parent=0
    #allocation2 [shape = 'u8[8192]{0}', space=vmem, size = 0x2000, scoped, tag = 'input window, operand 0']
    #allocation3 [shape = 's32[2]{0}', space=sflag, size = 0x8, scoped, tag = 'scoped memory for lstm_cell_forward.1']
    #allocation4 [shape = 'u8[8192]{0}', space=vmem, size = 0x2000, scoped, tag = 'input window, operand 1']
    #allocation5 [shape = 's32[2]{0}', space=sflag, size = 0x8, scoped, tag = 'scoped memory for lstm_cell_forward.1']
    #allocation6 [shape = 'u8[16384]{0}', space=vmem, size = 0x4000, scoped, tag = 'input window, operand 2, single buffered']
    #allocation7 [shape = 'u8[16384]{0}', space=vmem, size = 0x4000, scoped, tag = 'input window, operand 3, single buffered']
    #allocation8 [shape = 's32[1]{0}', space=sflag, size = 0x4, scoped, tag = 'scoped memory for lstm_cell_forward.1']
    %10 = vsyncpa [#allocation3], 0
    %s11 = scalar_lea.sflag [#allocation3], 1
    %12 = vsyncpa %s11, 0
    %13 = vsyncpa [#allocation5], 0
    %s14 = scalar_lea.sflag [#allocation5], 1
    %15 = vsyncpa %s14, 0
    %16 = vsyncpa [#allocation8], 0
    loop: start=0, step=1, limit=4
    $region2: #{lstm_cell_forward.1} parent=1 // loop_pre_header
      _
    $region3: #{lstm_cell_forward.1} parent=1 // loop_header
      %s18 = sphi 0, %s22
      %p19 = scmp.ge.s32.totalorder %s18, 4
      %s28 = sphi 0, %s30
      %s31 = sphi 0, %s28
      %s32 = sphi 0, %s31
      %s48 = sphi 0, %s32
      %s54 = sphi 0, %s56
      %s57 = sphi 0, %s54
      %s58 = sphi 0, %s57
      %s74 = sphi 0, %s58
      %s78 = sphi 0, %s78
      %s80 = sphi 0, %s78
      %s81 = sphi 0, %s80
      %s95 = sphi 0, %s81
      %s99 = sphi 0, %s99
      %s101 = sphi 0, %s99
      %s102 = sphi 0, %s101
      %s116 = sphi 0, %s102
      %s120 = sphi 0, %s120
      %s122 = sphi 0, %s120
      %s123 = sphi 0, %s122
      %s137 = sphi 0, %s123
      %s143 = sphi 0, %s145
      %s146 = sphi 0, %s143
      %s147 = sphi 0, %s146
      %s163 = sphi 0, %s147
    $region4: #{lstm_cell_forward.1} parent=1 // loop_header_branch
      %21 = sbr.rel (%p19) target = $region8
    $region5: #{lstm_cell_forward.1} parent=1 // loop_body
      %s23 = ssub.s32 %s18, 1
      %s24 = ssub.s32 %s18, 2
      %s25 = sadd.s32 %s18, 1
      %s26 = ssub.s32 %s18, %s25
      %p27 = scmp.eq.s32.totalorder %s26, 0
      %s29 = sadd.s32 %s28, 1
      %s30 = scalar_select %p27, %s28, %s29
      %p33 = pneg %p27
      %p34 = scmp.eq.s32.totalorder %s18, 1
      %p35 = por %p33, %p34
      %p36 = scmp.ne.s32.totalorder %s28, %s31
      %p37 = scmp.eq.s32.totalorder %s18, 0
      %p38 = por %p36, %p37
      %p39 = scmp.ne.s32.totalorder %s28, %s31
      %p40 = scmp.eq.s32.totalorder %s23, 1
      %p41 = por %p39, %p40
      %p42 = scmp.ne.s32.totalorder %s31, %s32
      %p43 = scmp.eq.s32.totalorder %s23, 0
      %p44 = por %p42, %p43
      %p45 = scmp.ne.s32.totalorder %s31, %s32
      %p46 = scmp.eq.s32.totalorder %s24, 1
      %p47 = por %p45, %p46
      %p49 = scmp.ne.s32.totalorder %s32, %s48
      %p50 = scmp.eq.s32.totalorder %s24, 0
      %p51 = por %p49, %p50
      %s52 = ssub.s32 %s18, %s25
      %p53 = scmp.eq.s32.totalorder %s52, 0
      %s55 = sadd.s32 %s54, 1
      %s56 = scalar_select %p53, %s54, %s55
      %p59 = pneg %p53
      %p60 = scmp.eq.s32.totalorder %s18, 1
      %p61 = por %p59, %p60
      %p62 = scmp.ne.s32.totalorder %s54, %s57
      %p63 = scmp.eq.s32.totalorder %s18, 0
      %p64 = por %p62, %p63
      %p65 = scmp.ne.s32.totalorder %s54, %s57
      %p66 = scmp.eq.s32.totalorder %s23, 1
      %p67 = por %p65, %p66
      %p68 = scmp.ne.s32.totalorder %s57, %s58
      %p69 = scmp.eq.s32.totalorder %s23, 0
      %p70 = por %p68, %p69
      %p71 = scmp.ne.s32.totalorder %s57, %s58
      %p72 = scmp.eq.s32.totalorder %s24, 1
      %p73 = por %p71, %p72
      %p75 = scmp.ne.s32.totalorder %s58, %s74
      %p76 = scmp.eq.s32.totalorder %s24, 0
      %p77 = por %p75, %p76
      %s79 = sadd.s32 %s78, 1
      %p82 = scmp.eq.s32.totalorder %s18, 1
      %p83 = scmp.ne.s32.totalorder %s78, %s80
      %p84 = scmp.eq.s32.totalorder %s18, 0
      %p85 = por %p83, %p84
      %p86 = scmp.ne.s32.totalorder %s78, %s80
      %p87 = scmp.eq.s32.totalorder %s23, 1
      %p88 = por %p86, %p87
      %p89 = scmp.ne.s32.totalorder %s80, %s81
      %p90 = scmp.eq.s32.totalorder %s23, 0
      %p91 = por %p89, %p90
      %p92 = scmp.ne.s32.totalorder %s80, %s81
      %p93 = scmp.eq.s32.totalorder %s24, 1
      %p94 = por %p92, %p93
      %p96 = scmp.ne.s32.totalorder %s81, %s95
      %p97 = scmp.eq.s32.totalorder %s24, 0
      %p98 = por %p96, %p97
      %s100 = sadd.s32 %s99, 1
      %p103 = scmp.eq.s32.totalorder %s18, 1
      %p104 = scmp.ne.s32.totalorder %s99, %s101
      %p105 = scmp.eq.s32.totalorder %s18, 0
      %p106 = por %p104, %p105
      %p107 = scmp.ne.s32.totalorder %s99, %s101
      %p108 = scmp.eq.s32.totalorder %s23, 1
      %p109 = por %p107, %p108
      %p110 = scmp.ne.s32.totalorder %s101, %s102
      %p111 = scmp.eq.s32.totalorder %s23, 0
      %p112 = por %p110, %p111
      %p113 = scmp.ne.s32.totalorder %s101, %s102
      %p114 = scmp.eq.s32.totalorder %s24, 1
      %p115 = por %p113, %p114
      %p117 = scmp.ne.s32.totalorder %s102, %s116
      %p118 = scmp.eq.s32.totalorder %s24, 0
      %p119 = por %p117, %p118
      %s121 = sadd.s32 %s120, 1
      %p124 = scmp.eq.s32.totalorder %s18, 1
      %p125 = scmp.ne.s32.totalorder %s120, %s122
      %p126 = scmp.eq.s32.totalorder %s18, 0
      %p127 = por %p125, %p126
      %p128 = scmp.ne.s32.totalorder %s120, %s122
      %p129 = scmp.eq.s32.totalorder %s23, 1
      %p130 = por %p128, %p129
      %p131 = scmp.ne.s32.totalorder %s122, %s123
      %p132 = scmp.eq.s32.totalorder %s23, 0
      %p133 = por %p131, %p132
      %p134 = scmp.ne.s32.totalorder %s122, %s123
      %p135 = scmp.eq.s32.totalorder %s24, 1
      %p136 = por %p134, %p135
      %p138 = scmp.ne.s32.totalorder %s123, %s137
      %p139 = scmp.eq.s32.totalorder %s24, 0
      %p140 = por %p138, %p139
      %s141 = ssub.s32 %s18, %s25
      %p142 = scmp.eq.s32.totalorder %s141, 0
      %s144 = sadd.s32 %s143, 1
      %s145 = scalar_select %p142, %s143, %s144
      %p148 = pneg %p142
      %p149 = scmp.eq.s32.totalorder %s18, 1
      %p150 = por %p148, %p149
      %p151 = scmp.ne.s32.totalorder %s143, %s146
      %p152 = scmp.eq.s32.totalorder %s18, 0
      %p153 = por %p151, %p152
      %p154 = scmp.ne.s32.totalorder %s143, %s146
      %p155 = scmp.eq.s32.totalorder %s23, 1
      %p156 = por %p154, %p155
      %p157 = scmp.ne.s32.totalorder %s146, %s147
      %p158 = scmp.eq.s32.totalorder %s23, 0
      %p159 = por %p157, %p158
      %p160 = scmp.ne.s32.totalorder %s146, %s147
      %p161 = scmp.eq.s32.totalorder %s24, 1
      %p162 = por %p160, %p161
      %p164 = scmp.ne.s32.totalorder %s147, %s163
      %p165 = scmp.eq.s32.totalorder %s24, 0
      %p166 = por %p164, %p165
      %p167 = scmp.le.s32.totalorder 1, %s18
      %p168 = scmp.lt.s32.totalorder %s18, 3
      %p169 = pnand %p167, %p168
      %p170 = pneg %p169
      // Predicated region
      $region9: #{lstm_cell_forward.1} parent=5 // pred_check
        _
      $region10: #{lstm_cell_forward.1} parent=5 // pred_check_branch
        %172 = sbr.rel (%p169) target = $region12
      $region11: #{lstm_cell_forward.1} parent=5 // pred_region
        %s173 = ssub.s32 %s18, 1
        // Predicated region
        $region13: #{lstm_cell_forward.1} parent=11 // pred_check
          %p174 = pneg %p91
        $region14: #{lstm_cell_forward.1} parent=11 // pred_check_branch
          %176 = sbr.rel (%p174) target = $region16
        $region15: #{lstm_cell_forward.1} parent=11 // pred_region
          %178 = vsyncadd [#allocation5], 0
          %s179 = sshll.u32 %s2, 4
          %s180 = int_to_ptr.hbm [resolvable:$true] %s179
          %s181 = sshll.u32 [#allocation6], 4
          %s182 = int_to_ptr.vmem [resolvable:$true] %s181
          %187 = dma.hbm_to_vmem [thread:$0]  %s180, 512, %s182, [#allocation5], 128, 128, 8
        $region16: #{lstm_cell_forward.1} parent=11 // pred_fallthru
          _
        // Predicated region
        $region17: #{lstm_cell_forward.1} parent=11 // pred_check
          %p188 = pneg %p112
        $region18: #{lstm_cell_forward.1} parent=11 // pred_check_branch
          %190 = sbr.rel (%p188) target = $region20
        $region19: #{lstm_cell_forward.1} parent=11 // pred_region
          %192 = vsyncadd [#allocation8], 0
          %s193 = sshll.u32 %s3, 4
          %s194 = int_to_ptr.hbm [resolvable:$true] %s193
          %s195 = sshll.u32 [#allocation7], 4
          %s196 = int_to_ptr.vmem [resolvable:$true] %s195
          %201 = dma.hbm_to_vmem [thread:$0]  %s194, 512, %s196, [#allocation8], 128, 128, 8
        $region20: #{lstm_cell_forward.1} parent=11 // pred_fallthru
          _
        // Predicated region
        $region21: #{lstm_cell_forward.1} parent=11 // pred_check
          %p202 = pneg %p133
        $region22: #{lstm_cell_forward.1} parent=11 // pred_check_branch
          %204 = sbr.rel (%p202) target = $region24
        $region23: #{lstm_cell_forward.1} parent=11 // pred_region
          _
        $region24: #{lstm_cell_forward.1} parent=11 // pred_fallthru
          _
      $region12: #{lstm_cell_forward.1} parent=5 // pred_fallthru
        _
      %p205 = scmp.lt.s32.totalorder %s18, 2
      // Predicated region
      $region25: #{lstm_cell_forward.1} parent=5 // pred_check
        %p206 = pneg %p205
      $region26: #{lstm_cell_forward.1} parent=5 // pred_check_branch
        %208 = sbr.rel (%p206) target = $region28
      $region27: #{lstm_cell_forward.1} parent=5 // pred_region
        // Predicated region
        $region29: #{lstm_cell_forward.1} parent=27 // pred_check
          %p209 = pneg %p38
        $region30: #{lstm_cell_forward.1} parent=27 // pred_check_branch
          %211 = sbr.rel (%p209) target = $region32
        $region31: #{lstm_cell_forward.1} parent=27 // pred_region
          %s212 = sand.u32 %s28, 1
          %s213 = scalar_lea.sflag [#allocation3], %s212
          %s214 = sand.u32 %s28, 1
          %s215 = smul.addr %s214, 8
          %s216 = scalar_lea.vmem [#allocation2], %s215
          %218 = vsyncadd %s213, 0
          %s219 = smul.addr %s18, 8
          %s220 = scalar_lea.hbm %s0, %s219
          %s222 = sshll.u32 %s220, 4
          %s223 = int_to_ptr.hbm [resolvable:$true] %s222
          %s224 = sshll.u32 %s216, 4
          %s225 = int_to_ptr.vmem [resolvable:$true] %s224
          %227 = dma.hbm_to_vmem [thread:$0]  %s223, 128, %s225, %s213
        $region32: #{lstm_cell_forward.1} parent=27 // pred_fallthru
          _
        // Predicated region
        $region33: #{lstm_cell_forward.1} parent=27 // pred_check
          %p228 = pneg %p64
        $region34: #{lstm_cell_forward.1} parent=27 // pred_check_branch
          %230 = sbr.rel (%p228) target = $region36
        $region35: #{lstm_cell_forward.1} parent=27 // pred_region
          %s231 = sand.u32 %s18, 1
          %s232 = scalar_lea.sflag [#allocation5], %s231
          %s233 = sand.u32 %s54, 1
          %s234 = smul.addr %s233, 8
          %s235 = scalar_lea.vmem [#allocation4], %s234
          %237 = vsyncadd %s232, 0
          %s238 = smul.addr %s18, 8
          %s239 = scalar_lea.hbm %s1, %s238
          %s241 = sshll.u32 %s239, 4
          %s242 = int_to_ptr.hbm [resolvable:$true] %s241
          %s243 = sshll.u32 %s235, 4
          %s244 = int_to_ptr.vmem [resolvable:$true] %s243
          %246 = dma.hbm_to_vmem [thread:$0]  %s242, 128, %s244, %s232
        $region36: #{lstm_cell_forward.1} parent=27 // pred_fallthru
          _
      $region28: #{lstm_cell_forward.1} parent=5 // pred_fallthru
        _
      %p247 = scmp.le.s32.totalorder 1, %s18
      %p248 = scmp.lt.s32.totalorder %s18, 3
      %p249 = pnand %p247, %p248
      %p250 = pneg %p249
      // Predicated region
      $region37: #{lstm_cell_forward.1} parent=5 // pred_check
        _
      $region38: #{lstm_cell_forward.1} parent=5 // pred_check_branch
        %252 = sbr.rel (%p249) target = $region40
      $region39: #{lstm_cell_forward.1} parent=5 // pred_region
        %s253 = ssub.s32 %s18, 1
        %s254 = sand.u32 %s31, 1
        %s255 = scalar_lea.sflag [#allocation3], %s254
        %s256 = sand.u32 %s31, 1
        %s257 = smul.addr %s256, 8
        %s258 = scalar_lea.vmem [#allocation2], %s257
        // Predicated region
        $region41: #{lstm_cell_forward.1} parent=39 // pred_check
          %p259 = pneg %p44
        $region42: #{lstm_cell_forward.1} parent=39 // pred_check_branch
          %261 = sbr.rel (%p259) target = $region44
        $region43: #{lstm_cell_forward.1} parent=39 // pred_region
          %263 = dma.done %s255, 128
        $region44: #{lstm_cell_forward.1} parent=39 // pred_fallthru
          _
        %s264 = sand.u32 %s23, 1
        %s265 = scalar_lea.sflag [#allocation5], %s264
        %s266 = sand.u32 %s57, 1
        %s267 = smul.addr %s266, 8
        %s268 = scalar_lea.vmem [#allocation4], %s267
        // Predicated region
        $region45: #{lstm_cell_forward.1} parent=39 // pred_check
          %p269 = pneg %p70
        $region46: #{lstm_cell_forward.1} parent=39 // pred_check_branch
          %271 = sbr.rel (%p269) target = $region48
        $region47: #{lstm_cell_forward.1} parent=39 // pred_region
          %273 = dma.done %s265, 128
        $region48: #{lstm_cell_forward.1} parent=39 // pred_fallthru
          _
        // Predicated region
        $region49: #{lstm_cell_forward.1} parent=39 // pred_check
          %p274 = pneg %p91
        $region50: #{lstm_cell_forward.1} parent=39 // pred_check_branch
          %276 = sbr.rel (%p274) target = $region52
        $region51: #{lstm_cell_forward.1} parent=39 // pred_region
          %278 = dma.done [#allocation5], 512
        $region52: #{lstm_cell_forward.1} parent=39 // pred_fallthru
          _
        // Predicated region
        $region53: #{lstm_cell_forward.1} parent=39 // pred_check
          %p279 = pneg %p112
        $region54: #{lstm_cell_forward.1} parent=39 // pred_check_branch
          %281 = sbr.rel (%p279) target = $region56
        $region55: #{lstm_cell_forward.1} parent=39 // pred_region
          %283 = dma.done [#allocation8], 512
        $region56: #{lstm_cell_forward.1} parent=39 // pred_fallthru
          _
        %s284 = sand.u32 %s31, 1
        %s285 = scalar_lea.sflag [#allocation3], %s284
        %s286 = sand.u32 %s31, 1
        %s287 = smul.addr %s286, 8
        %s288 = scalar_lea.vmem [#allocation2], %s287
        %p289 = pneg %p44
        %p290 = pneg %p41
        %s291 = sand.u32 %s23, 1
        %s292 = scalar_lea.sflag [#allocation5], %s291
        %s293 = sand.u32 %s57, 1
        %s294 = smul.addr %s293, 8
        %s295 = scalar_lea.vmem [#allocation4], %s294
        %p296 = pneg %p70
        %p297 = pneg %p67
        %p298 = pneg %p91
        %p299 = pneg %p88
        %p300 = pneg %p112
        %p301 = pneg %p109
        %p302 = pneg %p133
        %p303 = pneg %p130
        %p304 = pneg %p159
        %p305 = pneg %p156
        %p306 = scmp.lt.s32.totalorder %s23, 1
        %s307 = scalar_select %p306, %s23, 1
        %s308 = smul.addr %s307, 8
        %s309 = scalar_lea.vmem %s5, %s308
        %p310 = scmp.lt.s32.totalorder %s23, 1
        %s311 = scalar_select %p310, %s23, 1
        %s312 = smul.addr %s311, 8
        %s313 = scalar_lea.vmem %s5, %s312
        %v314 = vld [vmem:[%s258] sm:$0xff]
        %v315 = vld [vmem:[%s268] sm:$0xff]
        %v316 = vld [vmem:[#allocation6] sm:$0xff]
        %v317 = vld [vmem:[#allocation6 + $0x8] sm:$0xff]
        %v318 = vld [vmem:[#allocation6 + $0x10] sm:$0xff]
        %v319 = vld [vmem:[#allocation6 + $0x18] sm:$0xff]
        %v320 = vld [vmem:[#allocation7] sm:$0xff]
        %v321 = vld [vmem:[#allocation7 + $0x8] sm:$0xff]
        %v322 = vld [vmem:[#allocation7 + $0x10] sm:$0xff]
        %v323 = vld [vmem:[#allocation7 + $0x18] sm:$0xff]
        %vm324 = vcmask 261120
        %v326 = vsel %vm324, %v315, 0
        %328 = vmatpush.msra.mxu0 0.0
        %329 = vmatpush.msra.mxu0 0.0
        %330 = vmatpush.msra.mxu0 0.0
        %331 = vmatpush.msra.mxu0 0.0
        %332 = vmatpush.msra.mxu0 0.0
        %333 = vmatpush.msra.mxu0 0.0
        %334 = vmatpush.msra.mxu0 0.0
        %335 = vmatpush.msra.mxu0 0.0
        %336 = vmatpush.msra.mxu0 0.0
        %337 = vmatpush.msra.mxu0 0.0
        %338 = vmatpush.msra.mxu0 0.0
        %339 = vmatpush.msra.mxu0 0.0
        %340 = vmatpush.msra.mxu0 %v323
        %341 = vmatpush.msra.mxu0 %v322
        %342 = vmatpush.msra.mxu0 %v321
        %343 = vmatpush.msra.mxu0 %v320
        %344 = vmatmul.f32.gmra.mxu0 %v326
        %v345 = vpop.f32.mrf.mxu0
        %v346 = vadd.f32 0.0, %v345
        %347 = vdwg.mxu0
        %v349 = vsel %vm324, %v314, 0
        %351 = vmatpush.msra.mxu0 0.0
        %352 = vmatpush.msra.mxu0 0.0
        %353 = vmatpush.msra.mxu0 0.0
        %354 = vmatpush.msra.mxu0 0.0
        %355 = vmatpush.msra.mxu0 0.0
        %356 = vmatpush.msra.mxu0 0.0
        %357 = vmatpush.msra.mxu0 0.0
        %358 = vmatpush.msra.mxu0 0.0
        %359 = vmatpush.msra.mxu0 0.0
        %360 = vmatpush.msra.mxu0 0.0
        %361 = vmatpush.msra.mxu0 0.0
        %362 = vmatpush.msra.mxu0 0.0
        %363 = vmatpush.msra.mxu0 %v319
        %364 = vmatpush.msra.mxu0 %v318
        %365 = vmatpush.msra.mxu0 %v317
        %366 = vmatpush.msra.mxu0 %v316
        %367 = vmatmul.f32.gmra.mxu0 %v349
        %v368 = vpop.f32.mrf.mxu0
        %v369 = vadd.f32 %v346, %v368
        %370 = vdwg.mxu0
        %v371 = vld [vmem:[%s4] sm:$0x1]
        %v373 = vperm.slane %v371, 0
        %v375 = vadd.f32 %v369, %v373
        %v376 = vmul.f32 %v375, 0.5
        %v377 = vtanh.pop %v376
        %v378 = vmul.f32 %v377, 0.5
        %v379 = vadd.f32 %v378, 0.5
        %v380 = vtanh.pop %v375
        %v381 = vmul.f32 %v379, %v315
        %383 = vrot.lane.b32.xlu0 %v380, 64
        %v384 = vpop.permute.xlu0 %383
        %v386 = vmul.f32 %v379, %v384
        %388 = vrot.lane.b32.xlu0 %v386, 32
        %v389 = vpop.permute.xlu0 %388
        %v391 = vadd.f32 %v381, %v389
        %v392 = vtanh.pop %v391
        %394 = vrot.lane.b32.xlu0 %v392, 64
        %v395 = vpop.permute.xlu0 %394
        %v397 = vmul.f32 %v379, %v395
        %399 = vrot.lane.b32.xlu0 %v397, 32
        %v400 = vpop.permute.xlu0 %399
        %402 = vst.msk [vmem:[%s313] sm:$0xff] %vm324, %v400
        %vm403 = vcmask 523520
        %404 = vst.msk [vmem:[%s313] sm:$0xff] %vm403, %v391
        %p405 = scmp.lt.s32.totalorder %s23, 1
        %s406 = scalar_select %p405, %s23, 1
        %s407 = smul.addr %s406, 8
        %s408 = scalar_lea.vmem %s5, %s407
        // Predicated region
        $region57: #{lstm_cell_forward.1} parent=39 // pred_check
          %p409 = pneg %p156
        $region58: #{lstm_cell_forward.1} parent=39 // pred_check_branch
          %411 = sbr.rel (%p409) target = $region60
        $region59: #{lstm_cell_forward.1} parent=39 // pred_region
          _
        $region60: #{lstm_cell_forward.1} parent=39 // pred_fallthru
          _
      $region40: #{lstm_cell_forward.1} parent=5 // pred_fallthru
        _
      %p412 = scmp.le.s32.totalorder 2, %s18
      // Predicated region
      $region61: #{lstm_cell_forward.1} parent=5 // pred_check
        %p413 = pneg %p412
      $region62: #{lstm_cell_forward.1} parent=5 // pred_check_branch
        %415 = sbr.rel (%p413) target = $region64
      $region63: #{lstm_cell_forward.1} parent=5 // pred_region
        %s416 = ssub.s32 %s18, 2
        // Predicated region
        $region65: #{lstm_cell_forward.1} parent=63 // pred_check
          %p417 = pneg %p162
        $region66: #{lstm_cell_forward.1} parent=63 // pred_check_branch
          %419 = sbr.rel (%p417) target = $region68
        $region67: #{lstm_cell_forward.1} parent=63 // pred_region
          %p420 = scmp.lt.s32.totalorder %s24, 1
          %s421 = scalar_select %p420, %s24, 1
          %s422 = smul.addr %s421, 8
          %s423 = scalar_lea.vmem %s5, %s422
        $region68: #{lstm_cell_forward.1} parent=63 // pred_fallthru
          _
      $region64: #{lstm_cell_forward.1} parent=5 // pred_fallthru
        _
    $region6: #{lstm_cell_forward.1} parent=1 // loop_footer
      %s22 = sadd.s32 1, %s18
    $region7: #{lstm_cell_forward.1} parent=1 // loop_footer_branch
      %17 = sbr.rel target = $region3
    $region8: #{lstm_cell_forward.1} parent=1 // loop_exit
      _
    %424 = vsyncpa [#allocation3], 1
    %s425 = scalar_lea.sflag [#allocation3], 1
    %426 = vsyncpa %s425, 1
    %427 = vsyncpa [#allocation5], 1
    %s428 = scalar_lea.sflag [#allocation5], 1
    %429 = vsyncpa %s428, 1
    %430 = vsyncpa [#allocation8], 1

</llo_original>
